<compile_context>
chip_gen: v6e
topology: v6e:2x2x1
jax: 0.10.0
libtpu: 0.0.40
codegen_flags: <defaults>
</compile_context>

<pallas_src>
import functools

import jax
import jax.numpy as jnp
import numpy as np
from jax.experimental import pallas as pl
from jax.experimental.pallas import tpu as pltpu


THRESHOLD = 1.0   # snn.Leaky default threshold
SUB = 8           # sublane count: the single sample is broadcast to 8 rows in-kernel
NUM_LAYERS = 12   # live Linear+fire layers on the returned path

# (layer name, which real input width it consumes). Order == execution order of the
# live chain: InputArea.gran/sup -> Middle1..4 gran/sup -> OutputArea.gran/sup.
LIVE_CHAIN = (
    ("in_gran",  "input"),
    ("in_sup",   "layer"),
    ("m1_gran",  "layer"), ("m1_sup", "layer"),
    ("m2_gran",  "layer"), ("m2_sup", "layer"),
    ("m3_gran",  "layer"), ("m3_sup", "layer"),
    ("m4_gran",  "layer"), ("m4_sup", "layer"),
    ("out_gran", "layer"),
    ("out_sup",  "layer"),
)


def _round8(n: int) -> int:
    return ((n + 7) // 8) * 8


# ---------------------------------------------------------------------------
# Fused Pallas kernel: 12 x (Linear + LIF fire) chained entirely on-chip
# ---------------------------------------------------------------------------
def _fused_hierarchy_kernel(x_ref, w0_ref, wr_ref, b_ref, out_ref):
    """x_ref: (1, Din); w0_ref: (K0pad, Npad) first-layer weight, pre-transposed
    (in, out) and zero-padded; wr_ref: (NUM_LAYERS-1, Npad, Npad) remaining layers;
    b_ref: (NUM_LAYERS, 1, Npad); out_ref: (1, output_size)."""
    din = x_ref.shape[1]
    # Single sample -> broadcast across 8 sublanes (rows are independent; only row 0
    # is stored). Avoids a wrapper-side pad and keeps the matmuls sublane-aligned.
    h = jnp.broadcast_to(x_ref[...], (SUB, din))

    # Layer 0 (InputArea.granular): real K = input_size.
    z = jnp.dot(h, w0_ref[...], preferred_element_type=jnp.float32) + b_ref[0]
    h = (z > THRESHOLD).astype(jnp.float32)

    # Layers 1..11: static unroll, intermediates stay in vregs.
    for i in range(1, NUM_LAYERS):
        z = jnp.dot(h, wr_ref[i - 1], preferred_element_type=jnp.float32) + b_ref[i]
        h = (z > THRESHOLD).astype(jnp.float32)

    out_ref[...] = h[0:1, :out_ref.shape[1]]


@functools.partial(jax.jit, static_argnames=("output_size",))
def hierarchical_forward(x, target, w0, w_rest, b_stack, *, output_size):
    """Returns OutputArea.superficial spikes, shape (1, output_size)."""
    del target  # target only feeds dead training code in the reference.
    return pl.pallas_call(
        _fused_hierarchy_kernel,
        out_shape=jax.ShapeDtypeStruct((1, output_size), jnp.float32),
        in_specs=[
            pl.BlockSpec(memory_space=pltpu.MemorySpace.VMEM),
            pl.BlockSpec(memory_space=pltpu.MemorySpace.VMEM),
            pl.BlockSpec(memory_space=pltpu.MemorySpace.VMEM),
            pl.BlockSpec(memory_space=pltpu.MemorySpace.VMEM),
        ],
        out_specs=pl.BlockSpec(memory_space=pltpu.MemorySpace.VMEM),
    )(x, w0, w_rest, b_stack)


# ---------------------------------------------------------------------------
# Parameter construction (deterministic, nn.Linear-style init, torch layout)
# ---------------------------------------------------------------------------
def init_hierarchical_params(key, input_size, output_size, layer_size):
    L = layer_size
    shapes = [
        ("in_gran",  input_size + L, L),
        ("in_sup",   2 * L,          L),
        ("in_deep",  2 * L,          L),   # dead path (output discarded)
    ]
    for i in range(1, 5):
        shapes += [(f"m{i}_gran", 2 * L, L),
                   (f"m{i}_sup",  2 * L, L),
                   (f"m{i}_deep", 2 * L, L)]   # dead path
    shapes += [
        ("out_gran", 2 * L,       L),
        ("out_sup",  L,           output_size),
        ("out_deep", output_size, L),          # dead path
    ]
    params = {}
    for idx, (name, din, dout) in enumerate(shapes):
        kw, kb = jax.random.split(jax.random.fold_in(key, idx))
        bound = 1.0 / np.sqrt(din)  # bound uses the ORIGINAL fan-in (incl. feedback)
        params[name] = {
            "w": jax.random.uniform(kw, (dout, din), jnp.float32, -bound, bound),
            "b": jax.random.uniform(kb, (dout,), jnp.float32, -bound, bound),
        }
    return params


def build_live_stacks(params, *, input_size, layer_size, output_size):
    """Slice away the identically-zero feedback weight columns, transpose to (in, out),
    zero-pad only to sublane multiples of 8 (not 128), and stack the live layers.

    Returns: w0 (K0pad, Npad), w_rest (NUM_LAYERS-1, Npad, Npad), b (NUM_LAYERS, 1, Npad).
    """
    assert len(LIVE_CHAIN) == NUM_LAYERS
    npad = _round8(max(layer_size, output_size))
    k0pad = _round8(input_size)
    w0 = None
    ws_rest, bs = [], []
    for name, kind in LIVE_CHAIN:
        w = params[name]["w"]                      # (dout, din_full), torch layout
        b = params[name]["b"]                      # (dout,)
        din_real = input_size if kind == "input" else layer_size
        dout = w.shape[0]
        wt = w[:, :din_real].T                     # zero-feedback columns contribute 0
        if kind == "input":
            w0 = jnp.zeros((k0pad, npad), jnp.float32).at[:din_real, :dout].set(wt)
        else:
            # Padded K rows multiply only exact-0 activation columns -> contribute 0.
            ws_rest.append(
                jnp.zeros((npad, npad), jnp.float32).at[:din_real, :dout].set(wt))
        # Padded output lanes get bias 0 -> pre-activation 0 < 1 -> spike exactly 0.
        bs.append(jnp.zeros((1, npad), jnp.float32).at[0, :dout].set(b))
    return w0, jnp.stack(ws_rest), jnp.stack(bs)


# ---------------------------------------------------------------------------
# Pure-jnp reference mirroring the PyTorch forward (with explicit zero concats)
# ---------------------------------------------------------------------------
def _ref_fire(x, w, b):
    return ((x @ w.T + b[None, :]) > THRESHOLD).astype(jnp.float32)


def hierarchical_forward_ref(params, x, *, layer_size, output_size):
    L = layer_size
    zL = jnp.zeros((1, L), jnp.float32)
    zO = jnp.zeros((1, output_size), jnp.float32)
    p = lambda n: (params[n]["w"], params[n]["b"])
    g = _ref_fire(jnp.concatenate([x, zL], 1), *p("in_gran"))
    out = _ref_fire(jnp.concatenate([g, zL], 1), *p("in_sup"))
    for i in range(1, 5):
        fb = zO if i == 4 else zL   # middle_four's next area is OutputArea.superficial
        g = _ref_fire(jnp.concatenate([out, zL], 1), *p(f"m{i}_gran"))
        out = _ref_fire(jnp.concatenate([g, fb], 1), *p(f"m{i}_sup"))
    g = _ref_fire(jnp.concatenate([out, zL], 1), *p("out_gran"))
    return _ref_fire(g, *p("out_sup"))


if __name__ == "__main__":
    # Small shapes consistent with the module (the reference concatenations require
    # output_size == layer_size for the torch forward to run at all).
    input_size, layer_size, output_size = 64, 32, 32

    key = jax.random.PRNGKey(0)
    k_params, k_x = jax.random.split(key)
    params = init_hierarchical_params(k_params, input_size, output_size, layer_size)
    w0, w_rest, b_stack = build_live_stacks(
        params, input_size=input_size, layer_size=layer_size, output_size=output_size)

    # Scale input so that some neurons actually cross the 1.0 spike threshold.
    x = 4.0 * jax.random.normal(k_x, (1, input_size), jnp.float32)
    target = jnp.array(3, dtype=jnp.int32)

    out = hierarchical_forward(x, target, w0, w_rest, b_stack,
                               output_size=output_size)
    out = jax.block_until_ready(out)

    ref = hierarchical_forward_ref(params, x,
                                   layer_size=layer_size, output_size=output_size)
    assert out.shape == (1, output_size), out.shape
    assert np.array_equal(np.asarray(out), np.asarray(ref)), "kernel/reference mismatch"

    print("KERNEL_OK")
</pallas_src>

<mosaic_0001>
module attributes {stable_mosaic.version = 11 : i64} {
  func.func @_fused_hierarchy_kernel(%arg0: memref<1x64xf32, #tpu.memory_space<vmem>>, %arg1: memref<64x32xf32, #tpu.memory_space<vmem>>, %arg2: memref<11x32x32xf32, #tpu.memory_space<vmem>>, %arg3: memref<12x1x32xf32, #tpu.memory_space<vmem>>, %arg4: memref<1x32xf32, #tpu.memory_space<vmem>>) attributes {dimension_semantics = [], scalar_prefetch = 0 : i64, scratch_operands = 0 : i64, tpu.core_type = #tpu.core_type<tc>} {
    %c0 = arith.constant 0 : index
    %c0_0 = arith.constant 0 : index
    %0 = vector.load %arg0[%c0, %c0_0] : memref<1x64xf32, #tpu.memory_space<vmem>>, vector<1x64xf32>
    %1 = vector.shape_cast %0 : vector<1x64xf32> to vector<1x64xf32>
    %2 = vector.broadcast %1 : vector<1x64xf32> to vector<8x64xf32>
    %c0_1 = arith.constant 0 : index
    %c0_2 = arith.constant 0 : index
    %3 = vector.load %arg1[%c0_1, %c0_2] : memref<64x32xf32, #tpu.memory_space<vmem>>, vector<64x32xf32>
    %cst = arith.constant dense<0.000000e+00> : vector<8x32xf32>
    %4 = tpu.matmul %2, %3, %cst {dimension_numbers = #tpu.dot_dimension_numbers<[1], [0], [0], [1], [0, 0, 1, 1], [], []>} : vector<8x64xf32>, vector<64x32xf32>, vector<8x32xf32> -> vector<8x32xf32>
    %c0_3 = arith.constant 0 : index
    %c0_4 = arith.constant 0 : index
    %c0_5 = arith.constant 0 : index
    %5 = vector.load %arg3[%c0_3, %c0_4, %c0_5] : memref<12x1x32xf32, #tpu.memory_space<vmem>>, vector<1x1x32xf32>
    %6 = vector.shape_cast %5 : vector<1x1x32xf32> to vector<1x32xf32>
    %7 = vector.broadcast %6 : vector<1x32xf32> to vector<8x32xf32>
    %8 = arith.addf %4, %7 : vector<8x32xf32>
    %cst_6 = arith.constant 1.000000e+00 : f32
    %9 = vector.broadcast %cst_6 : f32 to vector<8x32xf32>
    %10 = arith.cmpf ogt, %8, %9 : vector<8x32xf32>
    %11 = arith.extui %10 : vector<8x32xi1> to vector<8x32xi32>
    %12 = arith.sitofp %11 : vector<8x32xi32> to vector<8x32xf32>
    %c0_7 = arith.constant 0 : index
    %c0_8 = arith.constant 0 : index
    %c0_9 = arith.constant 0 : index
    %13 = vector.load %arg2[%c0_7, %c0_8, %c0_9] : memref<11x32x32xf32, #tpu.memory_space<vmem>>, vector<1x32x32xf32>
    %14 = vector.shape_cast %13 : vector<1x32x32xf32> to vector<32x32xf32>
    %cst_10 = arith.constant dense<0.000000e+00> : vector<8x32xf32>
    %15 = tpu.matmul %12, %14, %cst_10 {dimension_numbers = #tpu.dot_dimension_numbers<[1], [0], [0], [1], [0, 0, 1, 1], [], []>} : vector<8x32xf32>, vector<32x32xf32>, vector<8x32xf32> -> vector<8x32xf32>
    %c1 = arith.constant 1 : index
    %c0_11 = arith.constant 0 : index
    %c0_12 = arith.constant 0 : index
    %16 = vector.load %arg3[%c1, %c0_11, %c0_12] : memref<12x1x32xf32, #tpu.memory_space<vmem>>, vector<1x1x32xf32>
    %17 = vector.shape_cast %16 : vector<1x1x32xf32> to vector<1x32xf32>
    %18 = vector.broadcast %17 : vector<1x32xf32> to vector<8x32xf32>
    %19 = arith.addf %15, %18 : vector<8x32xf32>
    %cst_13 = arith.constant 1.000000e+00 : f32
    %20 = vector.broadcast %cst_13 : f32 to vector<8x32xf32>
    %21 = arith.cmpf ogt, %19, %20 : vector<8x32xf32>
    %22 = arith.extui %21 : vector<8x32xi1> to vector<8x32xi32>
    %23 = arith.sitofp %22 : vector<8x32xi32> to vector<8x32xf32>
    %c1_14 = arith.constant 1 : index
    %c0_15 = arith.constant 0 : index
    %c0_16 = arith.constant 0 : index
    %24 = vector.load %arg2[%c1_14, %c0_15, %c0_16] : memref<11x32x32xf32, #tpu.memory_space<vmem>>, vector<1x32x32xf32>
    %25 = vector.shape_cast %24 : vector<1x32x32xf32> to vector<32x32xf32>
    %cst_17 = arith.constant dense<0.000000e+00> : vector<8x32xf32>
    %26 = tpu.matmul %23, %25, %cst_17 {dimension_numbers = #tpu.dot_dimension_numbers<[1], [0], [0], [1], [0, 0, 1, 1], [], []>} : vector<8x32xf32>, vector<32x32xf32>, vector<8x32xf32> -> vector<8x32xf32>
    %c2 = arith.constant 2 : index
    %c0_18 = arith.constant 0 : index
    %c0_19 = arith.constant 0 : index
    %27 = vector.load %arg3[%c2, %c0_18, %c0_19] : memref<12x1x32xf32, #tpu.memory_space<vmem>>, vector<1x1x32xf32>
    %28 = vector.shape_cast %27 : vector<1x1x32xf32> to vector<1x32xf32>
    %29 = vector.broadcast %28 : vector<1x32xf32> to vector<8x32xf32>
    %30 = arith.addf %26, %29 : vector<8x32xf32>
    %cst_20 = arith.constant 1.000000e+00 : f32
    %31 = vector.broadcast %cst_20 : f32 to vector<8x32xf32>
    %32 = arith.cmpf ogt, %30, %31 : vector<8x32xf32>
    %33 = arith.extui %32 : vector<8x32xi1> to vector<8x32xi32>
    %34 = arith.sitofp %33 : vector<8x32xi32> to vector<8x32xf32>
    %c2_21 = arith.constant 2 : index
    %c0_22 = arith.constant 0 : index
    %c0_23 = arith.constant 0 : index
    %35 = vector.load %arg2[%c2_21, %c0_22, %c0_23] : memref<11x32x32xf32, #tpu.memory_space<vmem>>, vector<1x32x32xf32>
    %36 = vector.shape_cast %35 : vector<1x32x32xf32> to vector<32x32xf32>
    %cst_24 = arith.constant dense<0.000000e+00> : vector<8x32xf32>
    %37 = tpu.matmul %34, %36, %cst_24 {dimension_numbers = #tpu.dot_dimension_numbers<[1], [0], [0], [1], [0, 0, 1, 1], [], []>} : vector<8x32xf32>, vector<32x32xf32>, vector<8x32xf32> -> vector<8x32xf32>
    %c3 = arith.constant 3 : index
    %c0_25 = arith.constant 0 : index
    %c0_26 = arith.constant 0 : index
    %38 = vector.load %arg3[%c3, %c0_25, %c0_26] : memref<12x1x32xf32, #tpu.memory_space<vmem>>, vector<1x1x32xf32>
    %39 = vector.shape_cast %38 : vector<1x1x32xf32> to vector<1x32xf32>
    %40 = vector.broadcast %39 : vector<1x32xf32> to vector<8x32xf32>
    %41 = arith.addf %37, %40 : vector<8x32xf32>
    %cst_27 = arith.constant 1.000000e+00 : f32
    %42 = vector.broadcast %cst_27 : f32 to vector<8x32xf32>
    %43 = arith.cmpf ogt, %41, %42 : vector<8x32xf32>
    %44 = arith.extui %43 : vector<8x32xi1> to vector<8x32xi32>
    %45 = arith.sitofp %44 : vector<8x32xi32> to vector<8x32xf32>
    %c3_28 = arith.constant 3 : index
    %c0_29 = arith.constant 0 : index
    %c0_30 = arith.constant 0 : index
    %46 = vector.load %arg2[%c3_28, %c0_29, %c0_30] : memref<11x32x32xf32, #tpu.memory_space<vmem>>, vector<1x32x32xf32>
    %47 = vector.shape_cast %46 : vector<1x32x32xf32> to vector<32x32xf32>
    %cst_31 = arith.constant dense<0.000000e+00> : vector<8x32xf32>
    %48 = tpu.matmul %45, %47, %cst_31 {dimension_numbers = #tpu.dot_dimension_numbers<[1], [0], [0], [1], [0, 0, 1, 1], [], []>} : vector<8x32xf32>, vector<32x32xf32>, vector<8x32xf32> -> vector<8x32xf32>
    %c4 = arith.constant 4 : index
    %c0_32 = arith.constant 0 : index
    %c0_33 = arith.constant 0 : index
    %49 = vector.load %arg3[%c4, %c0_32, %c0_33] : memref<12x1x32xf32, #tpu.memory_space<vmem>>, vector<1x1x32xf32>
    %50 = vector.shape_cast %49 : vector<1x1x32xf32> to vector<1x32xf32>
    %51 = vector.broadcast %50 : vector<1x32xf32> to vector<8x32xf32>
    %52 = arith.addf %48, %51 : vector<8x32xf32>
    %cst_34 = arith.constant 1.000000e+00 : f32
    %53 = vector.broadcast %cst_34 : f32 to vector<8x32xf32>
    %54 = arith.cmpf ogt, %52, %53 : vector<8x32xf32>
    %55 = arith.extui %54 : vector<8x32xi1> to vector<8x32xi32>
    %56 = arith.sitofp %55 : vector<8x32xi32> to vector<8x32xf32>
    %c4_35 = arith.constant 4 : index
    %c0_36 = arith.constant 0 : index
    %c0_37 = arith.constant 0 : index
    %57 = vector.load %arg2[%c4_35, %c0_36, %c0_37] : memref<11x32x32xf32, #tpu.memory_space<vmem>>, vector<1x32x32xf32>
    %58 = vector.shape_cast %57 : vector<1x32x32xf32> to vector<32x32xf32>
    %cst_38 = arith.constant dense<0.000000e+00> : vector<8x32xf32>
    %59 = tpu.matmul %56, %58, %cst_38 {dimension_numbers = #tpu.dot_dimension_numbers<[1], [0], [0], [1], [0, 0, 1, 1], [], []>} : vector<8x32xf32>, vector<32x32xf32>, vector<8x32xf32> -> vector<8x32xf32>
    %c5 = arith.constant 5 : index
    %c0_39 = arith.constant 0 : index
    %c0_40 = arith.constant 0 : index
    %60 = vector.load %arg3[%c5, %c0_39, %c0_40] : memref<12x1x32xf32, #tpu.memory_space<vmem>>, vector<1x1x32xf32>
    %61 = vector.shape_cast %60 : vector<1x1x32xf32> to vector<1x32xf32>
    %62 = vector.broadcast %61 : vector<1x32xf32> to vector<8x32xf32>
    %63 = arith.addf %59, %62 : vector<8x32xf32>
    %cst_41 = arith.constant 1.000000e+00 : f32
    %64 = vector.broadcast %cst_41 : f32 to vector<8x32xf32>
    %65 = arith.cmpf ogt, %63, %64 : vector<8x32xf32>
    %66 = arith.extui %65 : vector<8x32xi1> to vector<8x32xi32>
    %67 = arith.sitofp %66 : vector<8x32xi32> to vector<8x32xf32>
    %c5_42 = arith.constant 5 : index
    %c0_43 = arith.constant 0 : index
    %c0_44 = arith.constant 0 : index
    %68 = vector.load %arg2[%c5_42, %c0_43, %c0_44] : memref<11x32x32xf32, #tpu.memory_space<vmem>>, vector<1x32x32xf32>
    %69 = vector.shape_cast %68 : vector<1x32x32xf32> to vector<32x32xf32>
    %cst_45 = arith.constant dense<0.000000e+00> : vector<8x32xf32>
    %70 = tpu.matmul %67, %69, %cst_45 {dimension_numbers = #tpu.dot_dimension_numbers<[1], [0], [0], [1], [0, 0, 1, 1], [], []>} : vector<8x32xf32>, vector<32x32xf32>, vector<8x32xf32> -> vector<8x32xf32>
    %c6 = arith.constant 6 : index
    %c0_46 = arith.constant 0 : index
    %c0_47 = arith.constant 0 : index
    %71 = vector.load %arg3[%c6, %c0_46, %c0_47] : memref<12x1x32xf32, #tpu.memory_space<vmem>>, vector<1x1x32xf32>
    %72 = vector.shape_cast %71 : vector<1x1x32xf32> to vector<1x32xf32>
    %73 = vector.broadcast %72 : vector<1x32xf32> to vector<8x32xf32>
    %74 = arith.addf %70, %73 : vector<8x32xf32>
    %cst_48 = arith.constant 1.000000e+00 : f32
    %75 = vector.broadcast %cst_48 : f32 to vector<8x32xf32>
    %76 = arith.cmpf ogt, %74, %75 : vector<8x32xf32>
    %77 = arith.extui %76 : vector<8x32xi1> to vector<8x32xi32>
    %78 = arith.sitofp %77 : vector<8x32xi32> to vector<8x32xf32>
    %c6_49 = arith.constant 6 : index
    %c0_50 = arith.constant 0 : index
    %c0_51 = arith.constant 0 : index
    %79 = vector.load %arg2[%c6_49, %c0_50, %c0_51] : memref<11x32x32xf32, #tpu.memory_space<vmem>>, vector<1x32x32xf32>
    %80 = vector.shape_cast %79 : vector<1x32x32xf32> to vector<32x32xf32>
    %cst_52 = arith.constant dense<0.000000e+00> : vector<8x32xf32>
    %81 = tpu.matmul %78, %80, %cst_52 {dimension_numbers = #tpu.dot_dimension_numbers<[1], [0], [0], [1], [0, 0, 1, 1], [], []>} : vector<8x32xf32>, vector<32x32xf32>, vector<8x32xf32> -> vector<8x32xf32>
    %c7 = arith.constant 7 : index
    %c0_53 = arith.constant 0 : index
    %c0_54 = arith.constant 0 : index
    %82 = vector.load %arg3[%c7, %c0_53, %c0_54] : memref<12x1x32xf32, #tpu.memory_space<vmem>>, vector<1x1x32xf32>
    %83 = vector.shape_cast %82 : vector<1x1x32xf32> to vector<1x32xf32>
    %84 = vector.broadcast %83 : vector<1x32xf32> to vector<8x32xf32>
    %85 = arith.addf %81, %84 : vector<8x32xf32>
    %cst_55 = arith.constant 1.000000e+00 : f32
    %86 = vector.broadcast %cst_55 : f32 to vector<8x32xf32>
    %87 = arith.cmpf ogt, %85, %86 : vector<8x32xf32>
    %88 = arith.extui %87 : vector<8x32xi1> to vector<8x32xi32>
    %89 = arith.sitofp %88 : vector<8x32xi32> to vector<8x32xf32>
    %c7_56 = arith.constant 7 : index
    %c0_57 = arith.constant 0 : index
    %c0_58 = arith.constant 0 : index
    %90 = vector.load %arg2[%c7_56, %c0_57, %c0_58] : memref<11x32x32xf32, #tpu.memory_space<vmem>>, vector<1x32x32xf32>
    %91 = vector.shape_cast %90 : vector<1x32x32xf32> to vector<32x32xf32>
    %cst_59 = arith.constant dense<0.000000e+00> : vector<8x32xf32>
    %92 = tpu.matmul %89, %91, %cst_59 {dimension_numbers = #tpu.dot_dimension_numbers<[1], [0], [0], [1], [0, 0, 1, 1], [], []>} : vector<8x32xf32>, vector<32x32xf32>, vector<8x32xf32> -> vector<8x32xf32>
    %c8 = arith.constant 8 : index
    %c0_60 = arith.constant 0 : index
    %c0_61 = arith.constant 0 : index
    %93 = vector.load %arg3[%c8, %c0_60, %c0_61] : memref<12x1x32xf32, #tpu.memory_space<vmem>>, vector<1x1x32xf32>
    %94 = vector.shape_cast %93 : vector<1x1x32xf32> to vector<1x32xf32>
    %95 = vector.broadcast %94 : vector<1x32xf32> to vector<8x32xf32>
    %96 = arith.addf %92, %95 : vector<8x32xf32>
    %cst_62 = arith.constant 1.000000e+00 : f32
    %97 = vector.broadcast %cst_62 : f32 to vector<8x32xf32>
    %98 = arith.cmpf ogt, %96, %97 : vector<8x32xf32>
    %99 = arith.extui %98 : vector<8x32xi1> to vector<8x32xi32>
    %100 = arith.sitofp %99 : vector<8x32xi32> to vector<8x32xf32>
    %c8_63 = arith.constant 8 : index
    %c0_64 = arith.constant 0 : index
    %c0_65 = arith.constant 0 : index
    %101 = vector.load %arg2[%c8_63, %c0_64, %c0_65] : memref<11x32x32xf32, #tpu.memory_space<vmem>>, vector<1x32x32xf32>
    %102 = vector.shape_cast %101 : vector<1x32x32xf32> to vector<32x32xf32>
    %cst_66 = arith.constant dense<0.000000e+00> : vector<8x32xf32>
    %103 = tpu.matmul %100, %102, %cst_66 {dimension_numbers = #tpu.dot_dimension_numbers<[1], [0], [0], [1], [0, 0, 1, 1], [], []>} : vector<8x32xf32>, vector<32x32xf32>, vector<8x32xf32> -> vector<8x32xf32>
    %c9 = arith.constant 9 : index
    %c0_67 = arith.constant 0 : index
    %c0_68 = arith.constant 0 : index
    %104 = vector.load %arg3[%c9, %c0_67, %c0_68] : memref<12x1x32xf32, #tpu.memory_space<vmem>>, vector<1x1x32xf32>
    %105 = vector.shape_cast %104 : vector<1x1x32xf32> to vector<1x32xf32>
    %106 = vector.broadcast %105 : vector<1x32xf32> to vector<8x32xf32>
    %107 = arith.addf %103, %106 : vector<8x32xf32>
    %cst_69 = arith.constant 1.000000e+00 : f32
    %108 = vector.broadcast %cst_69 : f32 to vector<8x32xf32>
    %109 = arith.cmpf ogt, %107, %108 : vector<8x32xf32>
    %110 = arith.extui %109 : vector<8x32xi1> to vector<8x32xi32>
    %111 = arith.sitofp %110 : vector<8x32xi32> to vector<8x32xf32>
    %c9_70 = arith.constant 9 : index
    %c0_71 = arith.constant 0 : index
    %c0_72 = arith.constant 0 : index
    %112 = vector.load %arg2[%c9_70, %c0_71, %c0_72] : memref<11x32x32xf32, #tpu.memory_space<vmem>>, vector<1x32x32xf32>
    %113 = vector.shape_cast %112 : vector<1x32x32xf32> to vector<32x32xf32>
    %cst_73 = arith.constant dense<0.000000e+00> : vector<8x32xf32>
    %114 = tpu.matmul %111, %113, %cst_73 {dimension_numbers = #tpu.dot_dimension_numbers<[1], [0], [0], [1], [0, 0, 1, 1], [], []>} : vector<8x32xf32>, vector<32x32xf32>, vector<8x32xf32> -> vector<8x32xf32>
    %c10 = arith.constant 10 : index
    %c0_74 = arith.constant 0 : index
    %c0_75 = arith.constant 0 : index
    %115 = vector.load %arg3[%c10, %c0_74, %c0_75] : memref<12x1x32xf32, #tpu.memory_space<vmem>>, vector<1x1x32xf32>
    %116 = vector.shape_cast %115 : vector<1x1x32xf32> to vector<1x32xf32>
    %117 = vector.broadcast %116 : vector<1x32xf32> to vector<8x32xf32>
    %118 = arith.addf %114, %117 : vector<8x32xf32>
    %cst_76 = arith.constant 1.000000e+00 : f32
    %119 = vector.broadcast %cst_76 : f32 to vector<8x32xf32>
    %120 = arith.cmpf ogt, %118, %119 : vector<8x32xf32>
    %121 = arith.extui %120 : vector<8x32xi1> to vector<8x32xi32>
    %122 = arith.sitofp %121 : vector<8x32xi32> to vector<8x32xf32>
    %c10_77 = arith.constant 10 : index
    %c0_78 = arith.constant 0 : index
    %c0_79 = arith.constant 0 : index
    %123 = vector.load %arg2[%c10_77, %c0_78, %c0_79] : memref<11x32x32xf32, #tpu.memory_space<vmem>>, vector<1x32x32xf32>
    %124 = vector.shape_cast %123 : vector<1x32x32xf32> to vector<32x32xf32>
    %cst_80 = arith.constant dense<0.000000e+00> : vector<8x32xf32>
    %125 = tpu.matmul %122, %124, %cst_80 {dimension_numbers = #tpu.dot_dimension_numbers<[1], [0], [0], [1], [0, 0, 1, 1], [], []>} : vector<8x32xf32>, vector<32x32xf32>, vector<8x32xf32> -> vector<8x32xf32>
    %c11 = arith.constant 11 : index
    %c0_81 = arith.constant 0 : index
    %c0_82 = arith.constant 0 : index
    %126 = vector.load %arg3[%c11, %c0_81, %c0_82] : memref<12x1x32xf32, #tpu.memory_space<vmem>>, vector<1x1x32xf32>
    %127 = vector.shape_cast %126 : vector<1x1x32xf32> to vector<1x32xf32>
    %128 = vector.broadcast %127 : vector<1x32xf32> to vector<8x32xf32>
    %129 = arith.addf %125, %128 : vector<8x32xf32>
    %cst_83 = arith.constant 1.000000e+00 : f32
    %130 = vector.broadcast %cst_83 : f32 to vector<8x32xf32>
    %131 = arith.cmpf ogt, %129, %130 : vector<8x32xf32>
    %132 = arith.extui %131 : vector<8x32xi1> to vector<8x32xi32>
    %133 = arith.sitofp %132 : vector<8x32xi32> to vector<8x32xf32>
    %134 = vector.extract_strided_slice %133 {offsets = [0, 0], sizes = [1, 32], strides = [1, 1]} : vector<8x32xf32> to vector<1x32xf32>
    %c0_84 = arith.constant 0 : index
    %c0_85 = arith.constant 0 : index
    %135 = vector.load %arg4[%c0_84, %c0_85] : memref<1x32xf32, #tpu.memory_space<vmem>>, vector<1x32xf32>
    tpu.vector_store %arg4[%c0_84, %c0_85], %134 {strides = array<i32>} : memref<1x32xf32, #tpu.memory_space<vmem>>, vector<1x32xf32>,
    return
  }
}

</mosaic_0001>

<llo_original>
// kernel: hierarchical_forward.1
$region0: #{hierarchical_forward.1}
  #allocation0 [shape = 'u32[]', space=smem, size = 0x4, offset = 0x4, fixed_abs, tag = 'smem constant byte address 0x4 - core index']
  #allocation1 [shape = 'u32[144,128]{1,0:T(1,128)}', space=vmem, size = 0x12000, scoped, tag = 'internal scratch']
  %s0 = inlined_call_operand.vmem [shape: f32[1,64], index: 0, kind: input, shape index: {}]
  %s1 = inlined_call_operand.vmem [shape: f32[64,32], index: 1, kind: input, shape index: {}]
  %s2 = inlined_call_operand.hbm [shape: f32[11,32,32], index: 2, kind: input, shape index: {}]
  %s3 = inlined_call_operand.vmem [shape: f32[12,1,32], index: 3, kind: input, shape index: {}]
  %s4 = inlined_call_operand.hbm [shape: f32[1,32], index: 4, kind: output, shape index: {}]
  %s5 = sld [smem:[#allocation0]]
  $region30: #{hierarchical_forward.1} parent=0
    _
  %s7 = ssub.s32 1, %s5
  %s8 = scalar_select 0, %s7, %s5
  $region1: #{hierarchical_forward.1} parent=0
    #allocation2 [shape = 'u8[180224]{0}', space=vmem, size = 0x2c000, scoped, tag = 'input window, operand 2, single buffered']
    #allocation3 [shape = 's32[1]{0}', space=sflag, size = 0x4, scoped, tag = 'scoped memory for hierarchical_forward.1']
    #allocation4 [shape = 's32[1]{0}', space=sflag, size = 0x4, scoped, tag = 'scoped memory for hierarchical_forward.1']
    #allocation5 [shape = 'u8[512]{0}', space=vmem, size = 0x400, scoped, tag = 'output window, operand 0, single buffered']
    %9 = vsyncpa [#allocation3], 0
    %10 = vsyncpa [#allocation4], 0
    // Predicated region
    $region2: #{hierarchical_forward.1} parent=1 // pred_check
      _
    $region3: #{hierarchical_forward.1} parent=1 // pred_check_branch
      %12 = sbr.rel (0) target = $region5
    $region4: #{hierarchical_forward.1} parent=1 // pred_region
      _
    $region5: #{hierarchical_forward.1} parent=1 // pred_fallthru
      _
    // Predicated region
    $region6: #{hierarchical_forward.1} parent=1 // pred_check
      _
    $region7: #{hierarchical_forward.1} parent=1 // pred_check_branch
      %14 = sbr.rel (0) target = $region9
    $region8: #{hierarchical_forward.1} parent=1 // pred_region
      _
    $region9: #{hierarchical_forward.1} parent=1 // pred_fallthru
      _
    // Predicated region
    $region10: #{hierarchical_forward.1} parent=1 // pred_check
      _
    $region11: #{hierarchical_forward.1} parent=1 // pred_check_branch
      %16 = sbr.rel (0) target = $region13
    $region12: #{hierarchical_forward.1} parent=1 // pred_region
      %s18 = ssub.s32 5632, 5632
      %19 = vsyncadd [#allocation3], %s18
      %s20 = sshll.u32 [#allocation2], 4
      %s21 = int_to_ptr.vmem [resolvable:$true] %s20
      %26 = dma.hbm_to_vmem [thread:$0]  %s2, 5632, %s21, [#allocation3], 128, 128, 8
    $region13: #{hierarchical_forward.1} parent=1 // pred_fallthru
      _
    // Predicated region
    $region14: #{hierarchical_forward.1} parent=1 // pred_check
      _
    $region15: #{hierarchical_forward.1} parent=1 // pred_check_branch
      %28 = sbr.rel (0) target = $region17
    $region16: #{hierarchical_forward.1} parent=1 // pred_region
      _
    $region17: #{hierarchical_forward.1} parent=1 // pred_fallthru
      _
    // Predicated region
    $region18: #{hierarchical_forward.1} parent=1 // pred_check
      _
    $region19: #{hierarchical_forward.1} parent=1 // pred_check_branch
      %30 = sbr.rel (0) target = $region21
    $region20: #{hierarchical_forward.1} parent=1 // pred_region
      %31 = dma.done [#allocation3], 5632
    $region21: #{hierarchical_forward.1} parent=1 // pred_fallthru
      _
    %v32 = vld [vmem:[%s0] sm:$0x1]
    %v34 = vlaneseq
    %v35 = vshrl.u32 %v34, 7
    %v36 = vsub.s32 0, %v35
    %v37 = vrot.slane %v32, %v36
    %v38 = vld [vmem:[%s1] sm:$0xff]
    %v39 = vld [vmem:[%s1 + $0x8] sm:$0xff]
    %v40 = vld [vmem:[%s1 + $0x10] sm:$0xff]
    %v41 = vld [vmem:[%s1 + $0x18] sm:$0xff]
    %v42 = vld [vmem:[%s1 + $0x20] sm:$0xff]
    %v43 = vld [vmem:[%s1 + $0x28] sm:$0xff]
    %v44 = vld [vmem:[%s1 + $0x30] sm:$0xff]
    %v45 = vld [vmem:[%s1 + $0x38] sm:$0xff]
    %v46 = vld [vmem:[%s3] sm:$0x1]
    %v48 = vlaneseq
    %v49 = vshrl.u32 %v48, 7
    %v50 = vsub.s32 0, %v49
    %v51 = vrot.slane %v46, %v50
    %vm53 = vcmask 523264
    %v54 = vsel %vm53, %v37, 0
    %56 = vmatprep.subr.mxu0 0.0
    %57 = vmatpush1.msra.mxu0 0.0
    %58 = vmatprep.subr.mxu0 0.0
    %59 = vmatpush1.msra.mxu0 0.0
    %60 = vmatprep.subr.mxu0 0.0
    %61 = vmatpush1.msra.mxu0 0.0
    %62 = vmatprep.subr.mxu0 0.0
    %63 = vmatpush1.msra.mxu0 0.0
    %64 = vmatprep.subr.mxu0 0.0
    %65 = vmatpush1.msra.mxu0 0.0
    %66 = vmatprep.subr.mxu0 0.0
    %67 = vmatpush1.msra.mxu0 0.0
    %68 = vmatprep.subr.mxu0 0.0
    %69 = vmatpush1.msra.mxu0 0.0
    %70 = vmatprep.subr.mxu0 0.0
    %71 = vmatpush1.msra.mxu0 0.0
    %72 = vmatprep.subr.mxu0 0.0
    %73 = vmatpush1.msra.mxu0 %v45
    %74 = vmatprep.subr.mxu0 0.0
    %75 = vmatpush1.msra.mxu0 %v44
    %76 = vmatprep.subr.mxu0 0.0
    %77 = vmatpush1.msra.mxu0 %v43
    %78 = vmatprep.subr.mxu0 0.0
    %79 = vmatpush1.msra.mxu0 %v42
    %80 = vmatprep.subr.mxu0 0.0
    %81 = vmatpush1.msra.mxu0 %v41
    %82 = vmatprep.subr.mxu0 0.0
    %83 = vmatpush1.msra.mxu0 %v40
    %84 = vmatprep.subr.mxu0 0.0
    %85 = vmatpush1.msra.mxu0 %v39
    %86 = vmatprep.subr.mxu0 0.0
    %87 = vmatpush1.msra.mxu0 %v38
    %88 = vmatprep.subr.mxu0 0.0
    %89 = vmatpush2.msra.mxu0 0.0
    %90 = vmatprep.subr.mxu0 0.0
    %91 = vmatpush2.msra.mxu0 0.0
    %92 = vmatprep.subr.mxu0 0.0
    %93 = vmatpush2.msra.mxu0 0.0
    %94 = vmatprep.subr.mxu0 0.0
    %95 = vmatpush2.msra.mxu0 0.0
    %96 = vmatprep.subr.mxu0 0.0
    %97 = vmatpush2.msra.mxu0 0.0
    %98 = vmatprep.subr.mxu0 0.0
    %99 = vmatpush2.msra.mxu0 0.0
    %100 = vmatprep.subr.mxu0 0.0
    %101 = vmatpush2.msra.mxu0 0.0
    %102 = vmatprep.subr.mxu0 0.0
    %103 = vmatpush2.msra.mxu0 0.0
    %104 = vmatprep.subr.mxu0 0.0
    %105 = vmatpush2.msra.mxu0 0.0
    %106 = vmatprep.subr.mxu0 0.0
    %107 = vmatpush2.msra.mxu0 0.0
    %108 = vmatprep.subr.mxu0 0.0
    %109 = vmatpush2.msra.mxu0 0.0
    %110 = vmatprep.subr.mxu0 0.0
    %111 = vmatpush2.msra.mxu0 0.0
    %112 = vmatprep.subr.mxu0 0.0
    %113 = vmatpush2.msra.mxu0 0.0
    %114 = vmatprep.subr.mxu0 0.0
    %115 = vmatpush2.msra.mxu0 0.0
    %116 = vmatprep.subr.mxu0 0.0
    %117 = vmatpush2.msra.mxu0 0.0
    %118 = vmatprep.subr.mxu0 0.0
    %119 = vmatpush2.msra.mxu0 0.0
    %120 = vmatprep.mubr.f32.mxu0 0.0
    %121 = vmatmul.mubr.f32.gmra.mxu0 %v54
    %v122 = vpop.f32.mrf.mxu0
    %v123 = vadd.f32 %v51, %v122
    %v124 = vpop.f32.mrf.mxu0
    %125 = vdwg.mxu0
    %vm126 = vcmp.gt.f32.partialorder %v123, 1.0
    %v127 = vsel %vm126, 1, 0
    %v128 = vcvt.s32.f32 %v127
    %v129 = vld [vmem:[#allocation2] sm:$0xff]
    %v130 = vld [vmem:[#allocation2 + $0x8] sm:$0xff]
    %v131 = vld [vmem:[#allocation2 + $0x10] sm:$0xff]
    %v132 = vld [vmem:[#allocation2 + $0x18] sm:$0xff]
    %s133 = scalar_lea.vmem %s3, 1
    %v134 = vld [vmem:[%s133] sm:$0x1]
    %v136 = vlaneseq
    %v137 = vshrl.u32 %v136, 7
    %v138 = vsub.s32 0, %v137
    %v139 = vrot.slane %v134, %v138
    %vm141 = vcmask 261120
    %v143 = vsel %vm141, %v128, 0
    %145 = vmatprep.subr.mxu0 0.0
    %146 = vmatpush1.msra.mxu0 0.0
    %147 = vmatprep.subr.mxu0 0.0
    %148 = vmatpush1.msra.mxu0 0.0
    %149 = vmatprep.subr.mxu0 0.0
    %150 = vmatpush1.msra.mxu0 0.0
    %151 = vmatprep.subr.mxu0 0.0
    %152 = vmatpush1.msra.mxu0 0.0
    %153 = vmatprep.subr.mxu0 0.0
    %154 = vmatpush1.msra.mxu0 0.0
    %155 = vmatprep.subr.mxu0 0.0
    %156 = vmatpush1.msra.mxu0 0.0
    %157 = vmatprep.subr.mxu0 0.0
    %158 = vmatpush1.msra.mxu0 0.0
    %159 = vmatprep.subr.mxu0 0.0
    %160 = vmatpush1.msra.mxu0 0.0
    %161 = vmatprep.subr.mxu0 0.0
    %162 = vmatpush1.msra.mxu0 0.0
    %163 = vmatprep.subr.mxu0 0.0
    %164 = vmatpush1.msra.mxu0 0.0
    %165 = vmatprep.subr.mxu0 0.0
    %166 = vmatpush1.msra.mxu0 0.0
    %167 = vmatprep.subr.mxu0 0.0
    %168 = vmatpush1.msra.mxu0 0.0
    %169 = vmatprep.subr.mxu0 0.0
    %170 = vmatpush1.msra.mxu0 %v132
    %171 = vmatprep.subr.mxu0 0.0
    %172 = vmatpush1.msra.mxu0 %v131
    %173 = vmatprep.subr.mxu0 0.0
    %174 = vmatpush1.msra.mxu0 %v130
    %175 = vmatprep.subr.mxu0 0.0
    %176 = vmatpush1.msra.mxu0 %v129
    %177 = vmatprep.subr.mxu0 0.0
    %178 = vmatpush2.msra.mxu0 0.0
    %179 = vmatprep.subr.mxu0 0.0
    %180 = vmatpush2.msra.mxu0 0.0
    %181 = vmatprep.subr.mxu0 0.0
    %182 = vmatpush2.msra.mxu0 0.0
    %183 = vmatprep.subr.mxu0 0.0
    %184 = vmatpush2.msra.mxu0 0.0
    %185 = vmatprep.subr.mxu0 0.0
    %186 = vmatpush2.msra.mxu0 0.0
    %187 = vmatprep.subr.mxu0 0.0
    %188 = vmatpush2.msra.mxu0 0.0
    %189 = vmatprep.subr.mxu0 0.0
    %190 = vmatpush2.msra.mxu0 0.0
    %191 = vmatprep.subr.mxu0 0.0
    %192 = vmatpush2.msra.mxu0 0.0
    %193 = vmatprep.subr.mxu0 0.0
    %194 = vmatpush2.msra.mxu0 0.0
    %195 = vmatprep.subr.mxu0 0.0
    %196 = vmatpush2.msra.mxu0 0.0
    %197 = vmatprep.subr.mxu0 0.0
    %198 = vmatpush2.msra.mxu0 0.0
    %199 = vmatprep.subr.mxu0 0.0
    %200 = vmatpush2.msra.mxu0 0.0
    %201 = vmatprep.subr.mxu0 0.0
    %202 = vmatpush2.msra.mxu0 0.0
    %203 = vmatprep.subr.mxu0 0.0
    %204 = vmatpush2.msra.mxu0 0.0
    %205 = vmatprep.subr.mxu0 0.0
    %206 = vmatpush2.msra.mxu0 0.0
    %207 = vmatprep.subr.mxu0 0.0
    %208 = vmatpush2.msra.mxu0 0.0
    %209 = vmatprep.mubr.f32.mxu0 0.0
    %210 = vmatmul.mubr.f32.gmra.mxu0 %v143
    %v211 = vpop.f32.mrf.mxu0
    %v212 = vadd.f32 %v139, %v211
    %v213 = vpop.f32.mrf.mxu0
    %214 = vdwg.mxu0
    %vm215 = vcmp.gt.f32.partialorder %v212, 1.0
    %v216 = vsel %vm215, 1, 0
    %v217 = vcvt.s32.f32 %v216
    %s218 = scalar_lea.vmem [#allocation2], 32
    %v219 = vld [vmem:[%s218] sm:$0xff]
    %v220 = vld [vmem:[%s218 + $0x8] sm:$0xff]
    %v221 = vld [vmem:[%s218 + $0x10] sm:$0xff]
    %v222 = vld [vmem:[%s218 + $0x18] sm:$0xff]
    %s223 = scalar_lea.vmem %s3, 2
    %v224 = vld [vmem:[%s223] sm:$0x1]
    %v226 = vlaneseq
    %v227 = vshrl.u32 %v226, 7
    %v228 = vsub.s32 0, %v227
    %v229 = vrot.slane %v224, %v228
    %v232 = vsel %vm141, %v217, 0
    %234 = vmatprep.subr.mxu0 0.0
    %235 = vmatpush1.msra.mxu0 0.0
    %236 = vmatprep.subr.mxu0 0.0
    %237 = vmatpush1.msra.mxu0 0.0
    %238 = vmatprep.subr.mxu0 0.0
    %239 = vmatpush1.msra.mxu0 0.0
    %240 = vmatprep.subr.mxu0 0.0
    %241 = vmatpush1.msra.mxu0 0.0
    %242 = vmatprep.subr.mxu0 0.0
    %243 = vmatpush1.msra.mxu0 0.0
    %244 = vmatprep.subr.mxu0 0.0
    %245 = vmatpush1.msra.mxu0 0.0
    %246 = vmatprep.subr.mxu0 0.0
    %247 = vmatpush1.msra.mxu0 0.0
    %248 = vmatprep.subr.mxu0 0.0
    %249 = vmatpush1.msra.mxu0 0.0
    %250 = vmatprep.subr.mxu0 0.0
    %251 = vmatpush1.msra.mxu0 0.0
    %252 = vmatprep.subr.mxu0 0.0
    %253 = vmatpush1.msra.mxu0 0.0
    %254 = vmatprep.subr.mxu0 0.0
    %255 = vmatpush1.msra.mxu0 0.0
    %256 = vmatprep.subr.mxu0 0.0
    %257 = vmatpush1.msra.mxu0 0.0
    %258 = vmatprep.subr.mxu0 0.0
    %259 = vmatpush1.msra.mxu0 %v222
    %260 = vmatprep.subr.mxu0 0.0
    %261 = vmatpush1.msra.mxu0 %v221
    %262 = vmatprep.subr.mxu0 0.0
    %263 = vmatpush1.msra.mxu0 %v220
    %264 = vmatprep.subr.mxu0 0.0
    %265 = vmatpush1.msra.mxu0 %v219
    %266 = vmatprep.subr.mxu0 0.0
    %267 = vmatpush2.msra.mxu0 0.0
    %268 = vmatprep.subr.mxu0 0.0
    %269 = vmatpush2.msra.mxu0 0.0
    %270 = vmatprep.subr.mxu0 0.0
    %271 = vmatpush2.msra.mxu0 0.0
    %272 = vmatprep.subr.mxu0 0.0
    %273 = vmatpush2.msra.mxu0 0.0
    %274 = vmatprep.subr.mxu0 0.0
    %275 = vmatpush2.msra.mxu0 0.0
    %276 = vmatprep.subr.mxu0 0.0
    %277 = vmatpush2.msra.mxu0 0.0
    %278 = vmatprep.subr.mxu0 0.0
    %279 = vmatpush2.msra.mxu0 0.0
    %280 = vmatprep.subr.mxu0 0.0
    %281 = vmatpush2.msra.mxu0 0.0
    %282 = vmatprep.subr.mxu0 0.0
    %283 = vmatpush2.msra.mxu0 0.0
    %284 = vmatprep.subr.mxu0 0.0
    %285 = vmatpush2.msra.mxu0 0.0
    %286 = vmatprep.subr.mxu0 0.0
    %287 = vmatpush2.msra.mxu0 0.0
    %288 = vmatprep.subr.mxu0 0.0
    %289 = vmatpush2.msra.mxu0 0.0
    %290 = vmatprep.subr.mxu0 0.0
    %291 = vmatpush2.msra.mxu0 0.0
    %292 = vmatprep.subr.mxu0 0.0
    %293 = vmatpush2.msra.mxu0 0.0
    %294 = vmatprep.subr.mxu0 0.0
    %295 = vmatpush2.msra.mxu0 0.0
    %296 = vmatprep.subr.mxu0 0.0
    %297 = vmatpush2.msra.mxu0 0.0
    %298 = vmatprep.mubr.f32.mxu0 0.0
    %299 = vmatmul.mubr.f32.gmra.mxu0 %v232
    %v300 = vpop.f32.mrf.mxu0
    %v301 = vadd.f32 %v229, %v300
    %v302 = vpop.f32.mrf.mxu0
    %303 = vdwg.mxu0
    %vm304 = vcmp.gt.f32.partialorder %v301, 1.0
    %v305 = vsel %vm304, 1, 0
    %v306 = vcvt.s32.f32 %v305
    %s307 = scalar_lea.vmem [#allocation2], 64
    %v308 = vld [vmem:[%s307] sm:$0xff]
    %v309 = vld [vmem:[%s307 + $0x8] sm:$0xff]
    %v310 = vld [vmem:[%s307 + $0x10] sm:$0xff]
    %v311 = vld [vmem:[%s307 + $0x18] sm:$0xff]
    %s312 = scalar_lea.vmem %s3, 3
    %v313 = vld [vmem:[%s312] sm:$0x1]
    %v315 = vlaneseq
    %v316 = vshrl.u32 %v315, 7
    %v317 = vsub.s32 0, %v316
    %v318 = vrot.slane %v313, %v317
    %v321 = vsel %vm141, %v306, 0
    %323 = vmatprep.subr.mxu0 0.0
    %324 = vmatpush1.msra.mxu0 0.0
    %325 = vmatprep.subr.mxu0 0.0
    %326 = vmatpush1.msra.mxu0 0.0
    %327 = vmatprep.subr.mxu0 0.0
    %328 = vmatpush1.msra.mxu0 0.0
    %329 = vmatprep.subr.mxu0 0.0
    %330 = vmatpush1.msra.mxu0 0.0
    %331 = vmatprep.subr.mxu0 0.0
    %332 = vmatpush1.msra.mxu0 0.0
    %333 = vmatprep.subr.mxu0 0.0
    %334 = vmatpush1.msra.mxu0 0.0
    %335 = vmatprep.subr.mxu0 0.0
    %336 = vmatpush1.msra.mxu0 0.0
    %337 = vmatprep.subr.mxu0 0.0
    %338 = vmatpush1.msra.mxu0 0.0
    %339 = vmatprep.subr.mxu0 0.0
    %340 = vmatpush1.msra.mxu0 0.0
    %341 = vmatprep.subr.mxu0 0.0
    %342 = vmatpush1.msra.mxu0 0.0
    %343 = vmatprep.subr.mxu0 0.0
    %344 = vmatpush1.msra.mxu0 0.0
    %345 = vmatprep.subr.mxu0 0.0
    %346 = vmatpush1.msra.mxu0 0.0
    %347 = vmatprep.subr.mxu0 0.0
    %348 = vmatpush1.msra.mxu0 %v311
    %349 = vmatprep.subr.mxu0 0.0
    %350 = vmatpush1.msra.mxu0 %v310
    %351 = vmatprep.subr.mxu0 0.0
    %352 = vmatpush1.msra.mxu0 %v309
    %353 = vmatprep.subr.mxu0 0.0
    %354 = vmatpush1.msra.mxu0 %v308
    %355 = vmatprep.subr.mxu0 0.0
    %356 = vmatpush2.msra.mxu0 0.0
    %357 = vmatprep.subr.mxu0 0.0
    %358 = vmatpush2.msra.mxu0 0.0
    %359 = vmatprep.subr.mxu0 0.0
    %360 = vmatpush2.msra.mxu0 0.0
    %361 = vmatprep.subr.mxu0 0.0
    %362 = vmatpush2.msra.mxu0 0.0
    %363 = vmatprep.subr.mxu0 0.0
    %364 = vmatpush2.msra.mxu0 0.0
    %365 = vmatprep.subr.mxu0 0.0
    %366 = vmatpush2.msra.mxu0 0.0
    %367 = vmatprep.subr.mxu0 0.0
    %368 = vmatpush2.msra.mxu0 0.0
    %369 = vmatprep.subr.mxu0 0.0
    %370 = vmatpush2.msra.mxu0 0.0
    %371 = vmatprep.subr.mxu0 0.0
    %372 = vmatpush2.msra.mxu0 0.0
    %373 = vmatprep.subr.mxu0 0.0
    %374 = vmatpush2.msra.mxu0 0.0
    %375 = vmatprep.subr.mxu0 0.0
    %376 = vmatpush2.msra.mxu0 0.0
    %377 = vmatprep.subr.mxu0 0.0
    %378 = vmatpush2.msra.mxu0 0.0
    %379 = vmatprep.subr.mxu0 0.0
    %380 = vmatpush2.msra.mxu0 0.0
    %381 = vmatprep.subr.mxu0 0.0
    %382 = vmatpush2.msra.mxu0 0.0
    %383 = vmatprep.subr.mxu0 0.0
    %384 = vmatpush2.msra.mxu0 0.0
    %385 = vmatprep.subr.mxu0 0.0
    %386 = vmatpush2.msra.mxu0 0.0
    %387 = vmatprep.mubr.f32.mxu0 0.0
    %388 = vmatmul.mubr.f32.gmra.mxu0 %v321
    %v389 = vpop.f32.mrf.mxu0
    %v390 = vadd.f32 %v318, %v389
    %v391 = vpop.f32.mrf.mxu0
    %392 = vdwg.mxu0
    %vm393 = vcmp.gt.f32.partialorder %v390, 1.0
    %v394 = vsel %vm393, 1, 0
    %v395 = vcvt.s32.f32 %v394
    %s396 = scalar_lea.vmem [#allocation2], 96
    %v397 = vld [vmem:[%s396] sm:$0xff]
    %v398 = vld [vmem:[%s396 + $0x8] sm:$0xff]
    %v399 = vld [vmem:[%s396 + $0x10] sm:$0xff]
    %v400 = vld [vmem:[%s396 + $0x18] sm:$0xff]
    %s401 = scalar_lea.vmem %s3, 4
    %v402 = vld [vmem:[%s401] sm:$0x1]
    %v404 = vlaneseq
    %v405 = vshrl.u32 %v404, 7
    %v406 = vsub.s32 0, %v405
    %v407 = vrot.slane %v402, %v406
    %v410 = vsel %vm141, %v395, 0
    %412 = vmatprep.subr.mxu0 0.0
    %413 = vmatpush1.msra.mxu0 0.0
    %414 = vmatprep.subr.mxu0 0.0
    %415 = vmatpush1.msra.mxu0 0.0
    %416 = vmatprep.subr.mxu0 0.0
    %417 = vmatpush1.msra.mxu0 0.0
    %418 = vmatprep.subr.mxu0 0.0
    %419 = vmatpush1.msra.mxu0 0.0
    %420 = vmatprep.subr.mxu0 0.0
    %421 = vmatpush1.msra.mxu0 0.0
    %422 = vmatprep.subr.mxu0 0.0
    %423 = vmatpush1.msra.mxu0 0.0
    %424 = vmatprep.subr.mxu0 0.0
    %425 = vmatpush1.msra.mxu0 0.0
    %426 = vmatprep.subr.mxu0 0.0
    %427 = vmatpush1.msra.mxu0 0.0
    %428 = vmatprep.subr.mxu0 0.0
    %429 = vmatpush1.msra.mxu0 0.0
    %430 = vmatprep.subr.mxu0 0.0
    %431 = vmatpush1.msra.mxu0 0.0
    %432 = vmatprep.subr.mxu0 0.0
    %433 = vmatpush1.msra.mxu0 0.0
    %434 = vmatprep.subr.mxu0 0.0
    %435 = vmatpush1.msra.mxu0 0.0
    %436 = vmatprep.subr.mxu0 0.0
    %437 = vmatpush1.msra.mxu0 %v400
    %438 = vmatprep.subr.mxu0 0.0
    %439 = vmatpush1.msra.mxu0 %v399
    %440 = vmatprep.subr.mxu0 0.0
    %441 = vmatpush1.msra.mxu0 %v398
    %442 = vmatprep.subr.mxu0 0.0
    %443 = vmatpush1.msra.mxu0 %v397
    %444 = vmatprep.subr.mxu0 0.0
    %445 = vmatpush2.msra.mxu0 0.0
    %446 = vmatprep.subr.mxu0 0.0
    %447 = vmatpush2.msra.mxu0 0.0
    %448 = vmatprep.subr.mxu0 0.0
    %449 = vmatpush2.msra.mxu0 0.0
    %450 = vmatprep.subr.mxu0 0.0
    %451 = vmatpush2.msra.mxu0 0.0
    %452 = vmatprep.subr.mxu0 0.0
    %453 = vmatpush2.msra.mxu0 0.0
    %454 = vmatprep.subr.mxu0 0.0
    %455 = vmatpush2.msra.mxu0 0.0
    %456 = vmatprep.subr.mxu0 0.0
    %457 = vmatpush2.msra.mxu0 0.0
    %458 = vmatprep.subr.mxu0 0.0
    %459 = vmatpush2.msra.mxu0 0.0
    %460 = vmatprep.subr.mxu0 0.0
    %461 = vmatpush2.msra.mxu0 0.0
    %462 = vmatprep.subr.mxu0 0.0
    %463 = vmatpush2.msra.mxu0 0.0
    %464 = vmatprep.subr.mxu0 0.0
    %465 = vmatpush2.msra.mxu0 0.0
    %466 = vmatprep.subr.mxu0 0.0
    %467 = vmatpush2.msra.mxu0 0.0
    %468 = vmatprep.subr.mxu0 0.0
    %469 = vmatpush2.msra.mxu0 0.0
    %470 = vmatprep.subr.mxu0 0.0
    %471 = vmatpush2.msra.mxu0 0.0
    %472 = vmatprep.subr.mxu0 0.0
    %473 = vmatpush2.msra.mxu0 0.0
    %474 = vmatprep.subr.mxu0 0.0
    %475 = vmatpush2.msra.mxu0 0.0
    %476 = vmatprep.mubr.f32.mxu0 0.0
    %477 = vmatmul.mubr.f32.gmra.mxu0 %v410
    %v478 = vpop.f32.mrf.mxu0
    %v479 = vadd.f32 %v407, %v478
    %v480 = vpop.f32.mrf.mxu0
    %481 = vdwg.mxu0
    %vm482 = vcmp.gt.f32.partialorder %v479, 1.0
    %v483 = vsel %vm482, 1, 0
    %v484 = vcvt.s32.f32 %v483
    %s485 = scalar_lea.vmem [#allocation2], 128
    %v486 = vld [vmem:[%s485] sm:$0xff]
    %v487 = vld [vmem:[%s485 + $0x8] sm:$0xff]
    %v488 = vld [vmem:[%s485 + $0x10] sm:$0xff]
    %v489 = vld [vmem:[%s485 + $0x18] sm:$0xff]
    %s490 = scalar_lea.vmem %s3, 5
    %v491 = vld [vmem:[%s490] sm:$0x1]
    %v493 = vlaneseq
    %v494 = vshrl.u32 %v493, 7
    %v495 = vsub.s32 0, %v494
    %v496 = vrot.slane %v491, %v495
    %v499 = vsel %vm141, %v484, 0
    %501 = vmatprep.subr.mxu0 0.0
    %502 = vmatpush1.msra.mxu0 0.0
    %503 = vmatprep.subr.mxu0 0.0
    %504 = vmatpush1.msra.mxu0 0.0
    %505 = vmatprep.subr.mxu0 0.0
    %506 = vmatpush1.msra.mxu0 0.0
    %507 = vmatprep.subr.mxu0 0.0
    %508 = vmatpush1.msra.mxu0 0.0
    %509 = vmatprep.subr.mxu0 0.0
    %510 = vmatpush1.msra.mxu0 0.0
    %511 = vmatprep.subr.mxu0 0.0
    %512 = vmatpush1.msra.mxu0 0.0
    %513 = vmatprep.subr.mxu0 0.0
    %514 = vmatpush1.msra.mxu0 0.0
    %515 = vmatprep.subr.mxu0 0.0
    %516 = vmatpush1.msra.mxu0 0.0
    %517 = vmatprep.subr.mxu0 0.0
    %518 = vmatpush1.msra.mxu0 0.0
    %519 = vmatprep.subr.mxu0 0.0
    %520 = vmatpush1.msra.mxu0 0.0
    %521 = vmatprep.subr.mxu0 0.0
    %522 = vmatpush1.msra.mxu0 0.0
    %523 = vmatprep.subr.mxu0 0.0
    %524 = vmatpush1.msra.mxu0 0.0
    %525 = vmatprep.subr.mxu0 0.0
    %526 = vmatpush1.msra.mxu0 %v489
    %527 = vmatprep.subr.mxu0 0.0
    %528 = vmatpush1.msra.mxu0 %v488
    %529 = vmatprep.subr.mxu0 0.0
    %530 = vmatpush1.msra.mxu0 %v487
    %531 = vmatprep.subr.mxu0 0.0
    %532 = vmatpush1.msra.mxu0 %v486
    %533 = vmatprep.subr.mxu0 0.0
    %534 = vmatpush2.msra.mxu0 0.0
    %535 = vmatprep.subr.mxu0 0.0
    %536 = vmatpush2.msra.mxu0 0.0
    %537 = vmatprep.subr.mxu0 0.0
    %538 = vmatpush2.msra.mxu0 0.0
    %539 = vmatprep.subr.mxu0 0.0
    %540 = vmatpush2.msra.mxu0 0.0
    %541 = vmatprep.subr.mxu0 0.0
    %542 = vmatpush2.msra.mxu0 0.0
    %543 = vmatprep.subr.mxu0 0.0
    %544 = vmatpush2.msra.mxu0 0.0
    %545 = vmatprep.subr.mxu0 0.0
    %546 = vmatpush2.msra.mxu0 0.0
    %547 = vmatprep.subr.mxu0 0.0
    %548 = vmatpush2.msra.mxu0 0.0
    %549 = vmatprep.subr.mxu0 0.0
    %550 = vmatpush2.msra.mxu0 0.0
    %551 = vmatprep.subr.mxu0 0.0
    %552 = vmatpush2.msra.mxu0 0.0
    %553 = vmatprep.subr.mxu0 0.0
    %554 = vmatpush2.msra.mxu0 0.0
    %555 = vmatprep.subr.mxu0 0.0
    %556 = vmatpush2.msra.mxu0 0.0
    %557 = vmatprep.subr.mxu0 0.0
    %558 = vmatpush2.msra.mxu0 0.0
    %559 = vmatprep.subr.mxu0 0.0
    %560 = vmatpush2.msra.mxu0 0.0
    %561 = vmatprep.subr.mxu0 0.0
    %562 = vmatpush2.msra.mxu0 0.0
    %563 = vmatprep.subr.mxu0 0.0
    %564 = vmatpush2.msra.mxu0 0.0
    %565 = vmatprep.mubr.f32.mxu0 0.0
    %566 = vmatmul.mubr.f32.gmra.mxu0 %v499
    %v567 = vpop.f32.mrf.mxu0
    %v568 = vadd.f32 %v496, %v567
    %v569 = vpop.f32.mrf.mxu0
    %570 = vdwg.mxu0
    %vm571 = vcmp.gt.f32.partialorder %v568, 1.0
    %v572 = vsel %vm571, 1, 0
    %v573 = vcvt.s32.f32 %v572
    %s574 = scalar_lea.vmem [#allocation2], 160
    %v575 = vld [vmem:[%s574] sm:$0xff]
    %v576 = vld [vmem:[%s574 + $0x8] sm:$0xff]
    %v577 = vld [vmem:[%s574 + $0x10] sm:$0xff]
    %v578 = vld [vmem:[%s574 + $0x18] sm:$0xff]
    %s579 = scalar_lea.vmem %s3, 6
    %v580 = vld [vmem:[%s579] sm:$0x1]
    %v582 = vlaneseq
    %v583 = vshrl.u32 %v582, 7
    %v584 = vsub.s32 0, %v583
    %v585 = vrot.slane %v580, %v584
    %v588 = vsel %vm141, %v573, 0
    %590 = vmatprep.subr.mxu0 0.0
    %591 = vmatpush1.msra.mxu0 0.0
    %592 = vmatprep.subr.mxu0 0.0
    %593 = vmatpush1.msra.mxu0 0.0
    %594 = vmatprep.subr.mxu0 0.0
    %595 = vmatpush1.msra.mxu0 0.0
    %596 = vmatprep.subr.mxu0 0.0
    %597 = vmatpush1.msra.mxu0 0.0
    %598 = vmatprep.subr.mxu0 0.0
    %599 = vmatpush1.msra.mxu0 0.0
    %600 = vmatprep.subr.mxu0 0.0
    %601 = vmatpush1.msra.mxu0 0.0
    %602 = vmatprep.subr.mxu0 0.0
    %603 = vmatpush1.msra.mxu0 0.0
    %604 = vmatprep.subr.mxu0 0.0
    %605 = vmatpush1.msra.mxu0 0.0
    %606 = vmatprep.subr.mxu0 0.0
    %607 = vmatpush1.msra.mxu0 0.0
    %608 = vmatprep.subr.mxu0 0.0
    %609 = vmatpush1.msra.mxu0 0.0
    %610 = vmatprep.subr.mxu0 0.0
    %611 = vmatpush1.msra.mxu0 0.0
    %612 = vmatprep.subr.mxu0 0.0
    %613 = vmatpush1.msra.mxu0 0.0
    %614 = vmatprep.subr.mxu0 0.0
    %615 = vmatpush1.msra.mxu0 %v578
    %616 = vmatprep.subr.mxu0 0.0
    %617 = vmatpush1.msra.mxu0 %v577
    %618 = vmatprep.subr.mxu0 0.0
    %619 = vmatpush1.msra.mxu0 %v576
    %620 = vmatprep.subr.mxu0 0.0
    %621 = vmatpush1.msra.mxu0 %v575
    %622 = vmatprep.subr.mxu0 0.0
    %623 = vmatpush2.msra.mxu0 0.0
    %624 = vmatprep.subr.mxu0 0.0
    %625 = vmatpush2.msra.mxu0 0.0
    %626 = vmatprep.subr.mxu0 0.0
    %627 = vmatpush2.msra.mxu0 0.0
    %628 = vmatprep.subr.mxu0 0.0
    %629 = vmatpush2.msra.mxu0 0.0
    %630 = vmatprep.subr.mxu0 0.0
    %631 = vmatpush2.msra.mxu0 0.0
    %632 = vmatprep.subr.mxu0 0.0
    %633 = vmatpush2.msra.mxu0 0.0
    %634 = vmatprep.subr.mxu0 0.0
    %635 = vmatpush2.msra.mxu0 0.0
    %636 = vmatprep.subr.mxu0 0.0
    %637 = vmatpush2.msra.mxu0 0.0
    %638 = vmatprep.subr.mxu0 0.0
    %639 = vmatpush2.msra.mxu0 0.0
    %640 = vmatprep.subr.mxu0 0.0
    %641 = vmatpush2.msra.mxu0 0.0
    %642 = vmatprep.subr.mxu0 0.0
    %643 = vmatpush2.msra.mxu0 0.0
    %644 = vmatprep.subr.mxu0 0.0
    %645 = vmatpush2.msra.mxu0 0.0
    %646 = vmatprep.subr.mxu0 0.0
    %647 = vmatpush2.msra.mxu0 0.0
    %648 = vmatprep.subr.mxu0 0.0
    %649 = vmatpush2.msra.mxu0 0.0
    %650 = vmatprep.subr.mxu0 0.0
    %651 = vmatpush2.msra.mxu0 0.0
    %652 = vmatprep.subr.mxu0 0.0
    %653 = vmatpush2.msra.mxu0 0.0
    %654 = vmatprep.mubr.f32.mxu0 0.0
    %655 = vmatmul.mubr.f32.gmra.mxu0 %v588
    %v656 = vpop.f32.mrf.mxu0
    %v657 = vadd.f32 %v585, %v656
    %v658 = vpop.f32.mrf.mxu0
    %659 = vdwg.mxu0
    %vm660 = vcmp.gt.f32.partialorder %v657, 1.0
    %v661 = vsel %vm660, 1, 0
    %v662 = vcvt.s32.f32 %v661
    %s663 = scalar_lea.vmem [#allocation2], 192
    %v664 = vld [vmem:[%s663] sm:$0xff]
    %v665 = vld [vmem:[%s663 + $0x8] sm:$0xff]
    %v666 = vld [vmem:[%s663 + $0x10] sm:$0xff]
    %v667 = vld [vmem:[%s663 + $0x18] sm:$0xff]
    %s668 = scalar_lea.vmem %s3, 7
    %v669 = vld [vmem:[%s668] sm:$0x1]
    %v671 = vlaneseq
    %v672 = vshrl.u32 %v671, 7
    %v673 = vsub.s32 0, %v672
    %v674 = vrot.slane %v669, %v673
    %v677 = vsel %vm141, %v662, 0
    %679 = vmatprep.subr.mxu0 0.0
    %680 = vmatpush1.msra.mxu0 0.0
    %681 = vmatprep.subr.mxu0 0.0
    %682 = vmatpush1.msra.mxu0 0.0
    %683 = vmatprep.subr.mxu0 0.0
    %684 = vmatpush1.msra.mxu0 0.0
    %685 = vmatprep.subr.mxu0 0.0
    %686 = vmatpush1.msra.mxu0 0.0
    %687 = vmatprep.subr.mxu0 0.0
    %688 = vmatpush1.msra.mxu0 0.0
    %689 = vmatprep.subr.mxu0 0.0
    %690 = vmatpush1.msra.mxu0 0.0
    %691 = vmatprep.subr.mxu0 0.0
    %692 = vmatpush1.msra.mxu0 0.0
    %693 = vmatprep.subr.mxu0 0.0
    %694 = vmatpush1.msra.mxu0 0.0
    %695 = vmatprep.subr.mxu0 0.0
    %696 = vmatpush1.msra.mxu0 0.0
    %697 = vmatprep.subr.mxu0 0.0
    %698 = vmatpush1.msra.mxu0 0.0
    %699 = vmatprep.subr.mxu0 0.0
    %700 = vmatpush1.msra.mxu0 0.0
    %701 = vmatprep.subr.mxu0 0.0
    %702 = vmatpush1.msra.mxu0 0.0
    %703 = vmatprep.subr.mxu0 0.0
    %704 = vmatpush1.msra.mxu0 %v667
    %705 = vmatprep.subr.mxu0 0.0
    %706 = vmatpush1.msra.mxu0 %v666
    %707 = vmatprep.subr.mxu0 0.0
    %708 = vmatpush1.msra.mxu0 %v665
    %709 = vmatprep.subr.mxu0 0.0
    %710 = vmatpush1.msra.mxu0 %v664
    %711 = vmatprep.subr.mxu0 0.0
    %712 = vmatpush2.msra.mxu0 0.0
    %713 = vmatprep.subr.mxu0 0.0
    %714 = vmatpush2.msra.mxu0 0.0
    %715 = vmatprep.subr.mxu0 0.0
    %716 = vmatpush2.msra.mxu0 0.0
    %717 = vmatprep.subr.mxu0 0.0
    %718 = vmatpush2.msra.mxu0 0.0
    %719 = vmatprep.subr.mxu0 0.0
    %720 = vmatpush2.msra.mxu0 0.0
    %721 = vmatprep.subr.mxu0 0.0
    %722 = vmatpush2.msra.mxu0 0.0
    %723 = vmatprep.subr.mxu0 0.0
    %724 = vmatpush2.msra.mxu0 0.0
    %725 = vmatprep.subr.mxu0 0.0
    %726 = vmatpush2.msra.mxu0 0.0
    %727 = vmatprep.subr.mxu0 0.0
    %728 = vmatpush2.msra.mxu0 0.0
    %729 = vmatprep.subr.mxu0 0.0
    %730 = vmatpush2.msra.mxu0 0.0
    %731 = vmatprep.subr.mxu0 0.0
    %732 = vmatpush2.msra.mxu0 0.0
    %733 = vmatprep.subr.mxu0 0.0
    %734 = vmatpush2.msra.mxu0 0.0
    %735 = vmatprep.subr.mxu0 0.0
    %736 = vmatpush2.msra.mxu0 0.0
    %737 = vmatprep.subr.mxu0 0.0
    %738 = vmatpush2.msra.mxu0 0.0
    %739 = vmatprep.subr.mxu0 0.0
    %740 = vmatpush2.msra.mxu0 0.0
    %741 = vmatprep.subr.mxu0 0.0
    %742 = vmatpush2.msra.mxu0 0.0
    %743 = vmatprep.mubr.f32.mxu0 0.0
    %744 = vmatmul.mubr.f32.gmra.mxu0 %v677
    %v745 = vpop.f32.mrf.mxu0
    %v746 = vadd.f32 %v674, %v745
    %v747 = vpop.f32.mrf.mxu0
    %748 = vdwg.mxu0
    %vm749 = vcmp.gt.f32.partialorder %v746, 1.0
    %v750 = vsel %vm749, 1, 0
    %v751 = vcvt.s32.f32 %v750
    %s752 = scalar_lea.vmem [#allocation2], 224
    %v753 = vld [vmem:[%s752] sm:$0xff]
    %v754 = vld [vmem:[%s752 + $0x8] sm:$0xff]
    %v755 = vld [vmem:[%s752 + $0x10] sm:$0xff]
    %v756 = vld [vmem:[%s752 + $0x18] sm:$0xff]
    %s757 = scalar_lea.vmem %s3, 8
    %v758 = vld [vmem:[%s757] sm:$0x1]
    %v760 = vlaneseq
    %v761 = vshrl.u32 %v760, 7
    %v762 = vsub.s32 0, %v761
    %v763 = vrot.slane %v758, %v762
    %v766 = vsel %vm141, %v751, 0
    %768 = vmatprep.subr.mxu0 0.0
    %769 = vmatpush1.msra.mxu0 0.0
    %770 = vmatprep.subr.mxu0 0.0
    %771 = vmatpush1.msra.mxu0 0.0
    %772 = vmatprep.subr.mxu0 0.0
    %773 = vmatpush1.msra.mxu0 0.0
    %774 = vmatprep.subr.mxu0 0.0
    %775 = vmatpush1.msra.mxu0 0.0
    %776 = vmatprep.subr.mxu0 0.0
    %777 = vmatpush1.msra.mxu0 0.0
    %778 = vmatprep.subr.mxu0 0.0
    %779 = vmatpush1.msra.mxu0 0.0
    %780 = vmatprep.subr.mxu0 0.0
    %781 = vmatpush1.msra.mxu0 0.0
    %782 = vmatprep.subr.mxu0 0.0
    %783 = vmatpush1.msra.mxu0 0.0
    %784 = vmatprep.subr.mxu0 0.0
    %785 = vmatpush1.msra.mxu0 0.0
    %786 = vmatprep.subr.mxu0 0.0
    %787 = vmatpush1.msra.mxu0 0.0
    %788 = vmatprep.subr.mxu0 0.0
    %789 = vmatpush1.msra.mxu0 0.0
    %790 = vmatprep.subr.mxu0 0.0
    %791 = vmatpush1.msra.mxu0 0.0
    %792 = vmatprep.subr.mxu0 0.0
    %793 = vmatpush1.msra.mxu0 %v756
    %794 = vmatprep.subr.mxu0 0.0
    %795 = vmatpush1.msra.mxu0 %v755
    %796 = vmatprep.subr.mxu0 0.0
    %797 = vmatpush1.msra.mxu0 %v754
    %798 = vmatprep.subr.mxu0 0.0
    %799 = vmatpush1.msra.mxu0 %v753
    %800 = vmatprep.subr.mxu0 0.0
    %801 = vmatpush2.msra.mxu0 0.0
    %802 = vmatprep.subr.mxu0 0.0
    %803 = vmatpush2.msra.mxu0 0.0
    %804 = vmatprep.subr.mxu0 0.0
    %805 = vmatpush2.msra.mxu0 0.0
    %806 = vmatprep.subr.mxu0 0.0
    %807 = vmatpush2.msra.mxu0 0.0
    %808 = vmatprep.subr.mxu0 0.0
    %809 = vmatpush2.msra.mxu0 0.0
    %810 = vmatprep.subr.mxu0 0.0
    %811 = vmatpush2.msra.mxu0 0.0
    %812 = vmatprep.subr.mxu0 0.0
    %813 = vmatpush2.msra.mxu0 0.0
    %814 = vmatprep.subr.mxu0 0.0
    %815 = vmatpush2.msra.mxu0 0.0
    %816 = vmatprep.subr.mxu0 0.0
    %817 = vmatpush2.msra.mxu0 0.0
    %818 = vmatprep.subr.mxu0 0.0
    %819 = vmatpush2.msra.mxu0 0.0
    %820 = vmatprep.subr.mxu0 0.0
    %821 = vmatpush2.msra.mxu0 0.0
    %822 = vmatprep.subr.mxu0 0.0
    %823 = vmatpush2.msra.mxu0 0.0
    %824 = vmatprep.subr.mxu0 0.0
    %825 = vmatpush2.msra.mxu0 0.0
    %826 = vmatprep.subr.mxu0 0.0
    %827 = vmatpush2.msra.mxu0 0.0
    %828 = vmatprep.subr.mxu0 0.0
    %829 = vmatpush2.msra.mxu0 0.0
    %830 = vmatprep.subr.mxu0 0.0
    %831 = vmatpush2.msra.mxu0 0.0
    %832 = vmatprep.mubr.f32.mxu0 0.0
    %833 = vmatmul.mubr.f32.gmra.mxu0 %v766
    %v834 = vpop.f32.mrf.mxu0
    %v835 = vadd.f32 %v763, %v834
    %v836 = vpop.f32.mrf.mxu0
    %837 = vdwg.mxu0
    %vm838 = vcmp.gt.f32.partialorder %v835, 1.0
    %v839 = vsel %vm838, 1, 0
    %v840 = vcvt.s32.f32 %v839
    %s841 = scalar_lea.vmem [#allocation2], 256
    %v842 = vld [vmem:[%s841] sm:$0xff]
    %v843 = vld [vmem:[%s841 + $0x8] sm:$0xff]
    %v844 = vld [vmem:[%s841 + $0x10] sm:$0xff]
    %v845 = vld [vmem:[%s841 + $0x18] sm:$0xff]
    %s846 = scalar_lea.vmem %s3, 9
    %v847 = vld [vmem:[%s846] sm:$0x1]
    %v849 = vlaneseq
    %v850 = vshrl.u32 %v849, 7
    %v851 = vsub.s32 0, %v850
    %v852 = vrot.slane %v847, %v851
    %v855 = vsel %vm141, %v840, 0
    %857 = vmatprep.subr.mxu0 0.0
    %858 = vmatpush1.msra.mxu0 0.0
    %859 = vmatprep.subr.mxu0 0.0
    %860 = vmatpush1.msra.mxu0 0.0
    %861 = vmatprep.subr.mxu0 0.0
    %862 = vmatpush1.msra.mxu0 0.0
    %863 = vmatprep.subr.mxu0 0.0
    %864 = vmatpush1.msra.mxu0 0.0
    %865 = vmatprep.subr.mxu0 0.0
    %866 = vmatpush1.msra.mxu0 0.0
    %867 = vmatprep.subr.mxu0 0.0
    %868 = vmatpush1.msra.mxu0 0.0
    %869 = vmatprep.subr.mxu0 0.0
    %870 = vmatpush1.msra.mxu0 0.0
    %871 = vmatprep.subr.mxu0 0.0
    %872 = vmatpush1.msra.mxu0 0.0
    %873 = vmatprep.subr.mxu0 0.0
    %874 = vmatpush1.msra.mxu0 0.0
    %875 = vmatprep.subr.mxu0 0.0
    %876 = vmatpush1.msra.mxu0 0.0
    %877 = vmatprep.subr.mxu0 0.0
    %878 = vmatpush1.msra.mxu0 0.0
    %879 = vmatprep.subr.mxu0 0.0
    %880 = vmatpush1.msra.mxu0 0.0
    %881 = vmatprep.subr.mxu0 0.0
    %882 = vmatpush1.msra.mxu0 %v845
    %883 = vmatprep.subr.mxu0 0.0
    %884 = vmatpush1.msra.mxu0 %v844
    %885 = vmatprep.subr.mxu0 0.0
    %886 = vmatpush1.msra.mxu0 %v843
    %887 = vmatprep.subr.mxu0 0.0
    %888 = vmatpush1.msra.mxu0 %v842
    %889 = vmatprep.subr.mxu0 0.0
    %890 = vmatpush2.msra.mxu0 0.0
    %891 = vmatprep.subr.mxu0 0.0
    %892 = vmatpush2.msra.mxu0 0.0
    %893 = vmatprep.subr.mxu0 0.0
    %894 = vmatpush2.msra.mxu0 0.0
    %895 = vmatprep.subr.mxu0 0.0
    %896 = vmatpush2.msra.mxu0 0.0
    %897 = vmatprep.subr.mxu0 0.0
    %898 = vmatpush2.msra.mxu0 0.0
    %899 = vmatprep.subr.mxu0 0.0
    %900 = vmatpush2.msra.mxu0 0.0
    %901 = vmatprep.subr.mxu0 0.0
    %902 = vmatpush2.msra.mxu0 0.0
    %903 = vmatprep.subr.mxu0 0.0
    %904 = vmatpush2.msra.mxu0 0.0
    %905 = vmatprep.subr.mxu0 0.0
    %906 = vmatpush2.msra.mxu0 0.0
    %907 = vmatprep.subr.mxu0 0.0
    %908 = vmatpush2.msra.mxu0 0.0
    %909 = vmatprep.subr.mxu0 0.0
    %910 = vmatpush2.msra.mxu0 0.0
    %911 = vmatprep.subr.mxu0 0.0
    %912 = vmatpush2.msra.mxu0 0.0
    %913 = vmatprep.subr.mxu0 0.0
    %914 = vmatpush2.msra.mxu0 0.0
    %915 = vmatprep.subr.mxu0 0.0
    %916 = vmatpush2.msra.mxu0 0.0
    %917 = vmatprep.subr.mxu0 0.0
    %918 = vmatpush2.msra.mxu0 0.0
    %919 = vmatprep.subr.mxu0 0.0
    %920 = vmatpush2.msra.mxu0 0.0
    %921 = vmatprep.mubr.f32.mxu0 0.0
    %922 = vmatmul.mubr.f32.gmra.mxu0 %v855
    %v923 = vpop.f32.mrf.mxu0
    %v924 = vadd.f32 %v852, %v923
    %v925 = vpop.f32.mrf.mxu0
    %926 = vdwg.mxu0
    %vm927 = vcmp.gt.f32.partialorder %v924, 1.0
    %v928 = vsel %vm927, 1, 0
    %v929 = vcvt.s32.f32 %v928
    %s930 = scalar_lea.vmem [#allocation2], 288
    %v931 = vld [vmem:[%s930] sm:$0xff]
    %v932 = vld [vmem:[%s930 + $0x8] sm:$0xff]
    %v933 = vld [vmem:[%s930 + $0x10] sm:$0xff]
    %v934 = vld [vmem:[%s930 + $0x18] sm:$0xff]
    %s935 = scalar_lea.vmem %s3, 10
    %v936 = vld [vmem:[%s935] sm:$0x1]
    %v938 = vlaneseq
    %v939 = vshrl.u32 %v938, 7
    %v940 = vsub.s32 0, %v939
    %v941 = vrot.slane %v936, %v940
    %v944 = vsel %vm141, %v929, 0
    %946 = vmatprep.subr.mxu0 0.0
    %947 = vmatpush1.msra.mxu0 0.0
    %948 = vmatprep.subr.mxu0 0.0
    %949 = vmatpush1.msra.mxu0 0.0
    %950 = vmatprep.subr.mxu0 0.0
    %951 = vmatpush1.msra.mxu0 0.0
    %952 = vmatprep.subr.mxu0 0.0
    %953 = vmatpush1.msra.mxu0 0.0
    %954 = vmatprep.subr.mxu0 0.0
    %955 = vmatpush1.msra.mxu0 0.0
    %956 = vmatprep.subr.mxu0 0.0
    %957 = vmatpush1.msra.mxu0 0.0
    %958 = vmatprep.subr.mxu0 0.0
    %959 = vmatpush1.msra.mxu0 0.0
    %960 = vmatprep.subr.mxu0 0.0
    %961 = vmatpush1.msra.mxu0 0.0
    %962 = vmatprep.subr.mxu0 0.0
    %963 = vmatpush1.msra.mxu0 0.0
    %964 = vmatprep.subr.mxu0 0.0
    %965 = vmatpush1.msra.mxu0 0.0
    %966 = vmatprep.subr.mxu0 0.0
    %967 = vmatpush1.msra.mxu0 0.0
    %968 = vmatprep.subr.mxu0 0.0
    %969 = vmatpush1.msra.mxu0 0.0
    %970 = vmatprep.subr.mxu0 0.0
    %971 = vmatpush1.msra.mxu0 %v934
    %972 = vmatprep.subr.mxu0 0.0
    %973 = vmatpush1.msra.mxu0 %v933
    %974 = vmatprep.subr.mxu0 0.0
    %975 = vmatpush1.msra.mxu0 %v932
    %976 = vmatprep.subr.mxu0 0.0
    %977 = vmatpush1.msra.mxu0 %v931
    %978 = vmatprep.subr.mxu0 0.0
    %979 = vmatpush2.msra.mxu0 0.0
    %980 = vmatprep.subr.mxu0 0.0
    %981 = vmatpush2.msra.mxu0 0.0
    %982 = vmatprep.subr.mxu0 0.0
    %983 = vmatpush2.msra.mxu0 0.0
    %984 = vmatprep.subr.mxu0 0.0
    %985 = vmatpush2.msra.mxu0 0.0
    %986 = vmatprep.subr.mxu0 0.0
    %987 = vmatpush2.msra.mxu0 0.0
    %988 = vmatprep.subr.mxu0 0.0
    %989 = vmatpush2.msra.mxu0 0.0
    %990 = vmatprep.subr.mxu0 0.0
    %991 = vmatpush2.msra.mxu0 0.0
    %992 = vmatprep.subr.mxu0 0.0
    %993 = vmatpush2.msra.mxu0 0.0
    %994 = vmatprep.subr.mxu0 0.0
    %995 = vmatpush2.msra.mxu0 0.0
    %996 = vmatprep.subr.mxu0 0.0
    %997 = vmatpush2.msra.mxu0 0.0
    %998 = vmatprep.subr.mxu0 0.0
    %999 = vmatpush2.msra.mxu0 0.0
    %1000 = vmatprep.subr.mxu0 0.0
    %1001 = vmatpush2.msra.mxu0 0.0
    %1002 = vmatprep.subr.mxu0 0.0
    %1003 = vmatpush2.msra.mxu0 0.0
    %1004 = vmatprep.subr.mxu0 0.0
    %1005 = vmatpush2.msra.mxu0 0.0
    %1006 = vmatprep.subr.mxu0 0.0
    %1007 = vmatpush2.msra.mxu0 0.0
    %1008 = vmatprep.subr.mxu0 0.0
    %1009 = vmatpush2.msra.mxu0 0.0
    %1010 = vmatprep.mubr.f32.mxu0 0.0
    %1011 = vmatmul.mubr.f32.gmra.mxu0 %v944
    %v1012 = vpop.f32.mrf.mxu0
    %v1013 = vadd.f32 %v941, %v1012
    %v1014 = vpop.f32.mrf.mxu0
    %1015 = vdwg.mxu0
    %vm1016 = vcmp.gt.f32.partialorder %v1013, 1.0
    %v1017 = vsel %vm1016, 1, 0
    %v1018 = vcvt.s32.f32 %v1017
    %s1019 = scalar_lea.vmem [#allocation2], 320
    %v1020 = vld [vmem:[%s1019] sm:$0xff]
    %v1021 = vld [vmem:[%s1019 + $0x8] sm:$0xff]
    %v1022 = vld [vmem:[%s1019 + $0x10] sm:$0xff]
    %v1023 = vld [vmem:[%s1019 + $0x18] sm:$0xff]
    %s1024 = scalar_lea.vmem %s3, 11
    %v1025 = vld [vmem:[%s1024] sm:$0x1]
    %v1027 = vlaneseq
    %v1028 = vshrl.u32 %v1027, 7
    %v1029 = vsub.s32 0, %v1028
    %v1030 = vrot.slane %v1025, %v1029
    %v1033 = vsel %vm141, %v1018, 0
    %1035 = vmatprep.subr.mxu0 0.0
    %1036 = vmatpush1.msra.mxu0 0.0
    %1037 = vmatprep.subr.mxu0 0.0
    %1038 = vmatpush1.msra.mxu0 0.0
    %1039 = vmatprep.subr.mxu0 0.0
    %1040 = vmatpush1.msra.mxu0 0.0
    %1041 = vmatprep.subr.mxu0 0.0
    %1042 = vmatpush1.msra.mxu0 0.0
    %1043 = vmatprep.subr.mxu0 0.0
    %1044 = vmatpush1.msra.mxu0 0.0
    %1045 = vmatprep.subr.mxu0 0.0
    %1046 = vmatpush1.msra.mxu0 0.0
    %1047 = vmatprep.subr.mxu0 0.0
    %1048 = vmatpush1.msra.mxu0 0.0
    %1049 = vmatprep.subr.mxu0 0.0
    %1050 = vmatpush1.msra.mxu0 0.0
    %1051 = vmatprep.subr.mxu0 0.0
    %1052 = vmatpush1.msra.mxu0 0.0
    %1053 = vmatprep.subr.mxu0 0.0
    %1054 = vmatpush1.msra.mxu0 0.0
    %1055 = vmatprep.subr.mxu0 0.0
    %1056 = vmatpush1.msra.mxu0 0.0
    %1057 = vmatprep.subr.mxu0 0.0
    %1058 = vmatpush1.msra.mxu0 0.0
    %1059 = vmatprep.subr.mxu0 0.0
    %1060 = vmatpush1.msra.mxu0 %v1023
    %1061 = vmatprep.subr.mxu0 0.0
    %1062 = vmatpush1.msra.mxu0 %v1022
    %1063 = vmatprep.subr.mxu0 0.0
    %1064 = vmatpush1.msra.mxu0 %v1021
    %1065 = vmatprep.subr.mxu0 0.0
    %1066 = vmatpush1.msra.mxu0 %v1020
    %1067 = vmatprep.subr.mxu0 0.0
    %1068 = vmatpush2.msra.mxu0 0.0
    %1069 = vmatprep.subr.mxu0 0.0
    %1070 = vmatpush2.msra.mxu0 0.0
    %1071 = vmatprep.subr.mxu0 0.0
    %1072 = vmatpush2.msra.mxu0 0.0
    %1073 = vmatprep.subr.mxu0 0.0
    %1074 = vmatpush2.msra.mxu0 0.0
    %1075 = vmatprep.subr.mxu0 0.0
    %1076 = vmatpush2.msra.mxu0 0.0
    %1077 = vmatprep.subr.mxu0 0.0
    %1078 = vmatpush2.msra.mxu0 0.0
    %1079 = vmatprep.subr.mxu0 0.0
    %1080 = vmatpush2.msra.mxu0 0.0
    %1081 = vmatprep.subr.mxu0 0.0
    %1082 = vmatpush2.msra.mxu0 0.0
    %1083 = vmatprep.subr.mxu0 0.0
    %1084 = vmatpush2.msra.mxu0 0.0
    %1085 = vmatprep.subr.mxu0 0.0
    %1086 = vmatpush2.msra.mxu0 0.0
    %1087 = vmatprep.subr.mxu0 0.0
    %1088 = vmatpush2.msra.mxu0 0.0
    %1089 = vmatprep.subr.mxu0 0.0
    %1090 = vmatpush2.msra.mxu0 0.0
    %1091 = vmatprep.subr.mxu0 0.0
    %1092 = vmatpush2.msra.mxu0 0.0
    %1093 = vmatprep.subr.mxu0 0.0
    %1094 = vmatpush2.msra.mxu0 0.0
    %1095 = vmatprep.subr.mxu0 0.0
    %1096 = vmatpush2.msra.mxu0 0.0
    %1097 = vmatprep.subr.mxu0 0.0
    %1098 = vmatpush2.msra.mxu0 0.0
    %1099 = vmatprep.mubr.f32.mxu0 0.0
    %1100 = vmatmul.mubr.f32.gmra.mxu0 %v1033
    %v1101 = vpop.f32.mrf.mxu0
    %v1102 = vadd.f32 %v1030, %v1101
    %v1103 = vpop.f32.mrf.mxu0
    %1104 = vdwg.mxu0
    %vm1105 = vcmp.gt.f32.partialorder %v1102, 1.0
    %v1106 = vsel %vm1105, 1, 0
    %v1107 = vcvt.s32.f32 %v1106
    %vm1108 = vcmask 253952
    %1109 = vst.msk [vmem:[#allocation5] sm:$0x1] %vm1108, %v1107
    // Predicated region
    $region22: #{hierarchical_forward.1} parent=1 // pred_check
      _
    $region23: #{hierarchical_forward.1} parent=1 // pred_check_branch
      %1111 = sbr.rel (0) target = $region25
    $region24: #{hierarchical_forward.1} parent=1 // pred_region
      %s1113 = ssub.s32 16, 16
      %1114 = vsyncadd [#allocation4], %s1113
      %s1116 = sshll.u32 [#allocation5], 4
      %s1117 = int_to_ptr.vmem [resolvable:$true] %s1116
      %1119 = dma.vmem_to_hbm [thread:$0]  %s1117, 16, %s4, [#allocation4]
    $region25: #{hierarchical_forward.1} parent=1 // pred_fallthru
      _
    // Predicated region
    $region26: #{hierarchical_forward.1} parent=1 // pred_check
      _
    $region27: #{hierarchical_forward.1} parent=1 // pred_check_branch
      %1121 = sbr.rel (0) target = $region29
    $region28: #{hierarchical_forward.1} parent=1 // pred_region
      %1122 = dma.done [#allocation4], 16
    $region29: #{hierarchical_forward.1} parent=1 // pred_fallthru
      _
    %1123 = vsyncpa [#allocation3], 1
    %1124 = vsyncpa [#allocation4], 1

</llo_original>
